<compile_context>
chip_gen: v7x
topology: tpu7x:2x2x1
jax: 0.10.0
libtpu: 0.0.40
codegen_flags: <defaults>
</compile_context>

<pallas_src>
import functools

import jax
import jax.numpy as jnp
from jax.experimental import pallas as pl
from jax.experimental.pallas import tpu as pltpu

LANES = 128
SUBLANES = 8


def _cdiv(a, b):
    return -(-a // b)


def _jaccard_partial_kernel(p_ref, t_ref, num_out_ref, den_out_ref,
                            acc_num, acc_den, *,
                            full_rows, block_rows, blocks_per_chunk,
                            total_blocks):
    c = pl.program_id(0)   # chunk axis (cores on v7x; degenerate size-1 else)
    i = pl.program_id(1)   # block axis within chunk ("arbitrary")

    @pl.when(i == 0)
    def _():
        acc_num[...] = jnp.zeros_like(acc_num)
        acc_den[...] = jnp.zeros_like(acc_den)

    blk = c * blocks_per_chunk + i
    row_base = blk * block_rows
    is_dup = blk >= total_blocks                 # clamped duplicate -> skip
    is_full = row_base + block_rows <= full_rows  # fully valid block

    def sigmoid(x):
        # exp -> EUP, approx reciprocal -> EUP; keeps VALU for the adds/muls.
        return pl.reciprocal(1.0 + jnp.exp(-x), approx=True)

    def accumulate(p, t):
        pt = p * t   # -> sum(pred * target)            (numerator)
        ps = p + t   # -> sum(pred) + sum(target) fused (denominator part)
        if block_rows % SUBLANES == 0:
            # Vreg-wise partial reduction: pure VPU adds, no cross-lane work.
            acc_num[...] += jnp.sum(pt.reshape(-1, SUBLANES, LANES), axis=0)
            acc_den[...] += jnp.sum(ps.reshape(-1, SUBLANES, LANES), axis=0)
        else:
            # Tiny-input fallback (block_rows == full_rows < 8).
            acc_num[0:1, :] += jnp.sum(pt, axis=0, keepdims=True)
            acc_den[0:1, :] += jnp.sum(ps, axis=0, keepdims=True)

    # Fast path: interior blocks, no masking at all (keeps the kernel
    # HBM-bound instead of VALU-bound).
    @pl.when(is_full & jnp.logical_not(is_dup))
    def _():
        p = sigmoid(p_ref[...].astype(jnp.float32))
        t = t_ref[...].astype(jnp.float32)
        accumulate(p, t)

    # Slow path: the single partial edge block; mask grid-overrun rows only
    # (one iota, one compare, two selects — runs at most once per chunk).
    @pl.when(jnp.logical_not(is_full) & jnp.logical_not(is_dup))
    def _():
        valid_rows = full_rows - row_base
        rid = jax.lax.broadcasted_iota(jnp.int32, (block_rows, LANES), 0)
        rmask = rid < valid_rows
        p = jnp.where(rmask, sigmoid(p_ref[...].astype(jnp.float32)), 0.0)
        t = jnp.where(rmask, t_ref[...].astype(jnp.float32), 0.0)
        accumulate(p, t)

    @pl.when(i == pl.num_programs(1) - 1)
    def _():
        num_out_ref[...] = acc_num[...]
        den_out_ref[...] = acc_den[...]


def jaccard_loss(predictive, target, *, smooth=1e-6, p=2, reduction="mean",
                 loss_weight=1.0, block_rows=4096, num_chunks=1,
                 core_parallel=False):
    """Matches JaccardLoss.forward. `p` is unused in the reference forward."""
    assert predictive.shape[0] == target.shape[0], \
        "predict & target batch size don't match"
    if reduction not in ("mean", "sum"):
        raise Exception("Unexpected reduction {}".format(reduction))
    # 'mean'/'sum' on a 0-d loss are both the identity, as in the reference.

    pred_flat = predictive.reshape(-1)
    targ_flat = target.reshape(-1)
    n = pred_flat.shape[0]
    full_rows, tail = divmod(n, LANES)

    num = jnp.float32(0.0)
    den_sum = jnp.float32(0.0)   # sum(pred) + sum(target)

    if full_rows > 0:
        main = full_rows * LANES
        pred2d = pred_flat[:main].reshape(full_rows, LANES)
        targ2d = targ_flat[:main].reshape(full_rows, LANES)

        block_rows = max(1, min(block_rows, full_rows))
        total_blocks = _cdiv(full_rows, block_rows)
        num_chunks = max(1, min(num_chunks, total_blocks))
        blocks_per_chunk = _cdiv(total_blocks, num_chunks)

        def in_map(c, i):
            # Clamp so duplicated blocks in the last chunk stay in bounds;
            # their contribution is skipped by the in-kernel pl.when.
            return (jnp.minimum(c * blocks_per_chunk + i, total_blocks - 1), 0)

        kernel = functools.partial(
            _jaccard_partial_kernel,
            full_rows=full_rows, block_rows=block_rows,
            blocks_per_chunk=blocks_per_chunk, total_blocks=total_blocks)

        if num_chunks > 1 and core_parallel:
            chunk_sem = pltpu.CORE_PARALLEL      # v7x: split across the 2 TCs
        elif num_chunks > 1:
            chunk_sem = "parallel"
        else:
            chunk_sem = "arbitrary"

        num_p, den_p = pl.pallas_call(
            kernel,
            out_shape=(
                jax.ShapeDtypeStruct((num_chunks, SUBLANES, LANES),
                                     jnp.float32),
                jax.ShapeDtypeStruct((num_chunks, SUBLANES, LANES),
                                     jnp.float32),
            ),
            grid_spec=pltpu.PrefetchScalarGridSpec(
                num_scalar_prefetch=0,
                grid=(num_chunks, blocks_per_chunk),
                in_specs=[
                    pl.BlockSpec((block_rows, LANES), in_map),
                    pl.BlockSpec((block_rows, LANES), in_map),
                ],
                out_specs=(
                    pl.BlockSpec((None, SUBLANES, LANES),
                                 lambda c, i: (c, 0, 0)),
                    pl.BlockSpec((None, SUBLANES, LANES),
                                 lambda c, i: (c, 0, 0)),
                ),
                scratch_shapes=[
                    pltpu.VMEM((SUBLANES, LANES), jnp.float32),
                    pltpu.VMEM((SUBLANES, LANES), jnp.float32),
                ],
            ),
            compiler_params=pltpu.CompilerParams(
                dimension_semantics=(chunk_sem, "arbitrary")),
        )(pred2d, targ2d)

        # Tiny epilogue: one cross-lane reduce over (num_chunks, 8, 128).
        num = jnp.sum(num_p)
        den_sum = jnp.sum(den_p)

    if tail:
        # <=127 leftover elements: plain JAX, negligible cost, no padded copy.
        p_tail = jax.nn.sigmoid(
            pred_flat[full_rows * LANES:].astype(jnp.float32))
        t_tail = targ_flat[full_rows * LANES:].astype(jnp.float32)
        num = num + jnp.sum(p_tail * t_tail)
        den_sum = den_sum + jnp.sum(p_tail) + jnp.sum(t_tail)

    den = den_sum - num
    loss = 1.0 - (num + smooth) / (den + smooth)
    return loss_weight * loss


def jaccard_loss_ref(predictive, target, *, smooth=1e-6, loss_weight=1.0):
    pr = jax.nn.sigmoid(predictive.astype(jnp.float32)).reshape(-1)
    t = target.astype(jnp.float32).reshape(-1)
    num = jnp.sum(pr * t)
    den = jnp.sum(pr) + jnp.sum(t) - num
    return loss_weight * (1.0 - (num + smooth) / (den + smooth))


if __name__ == "__main__":
    key = jax.random.PRNGKey(0)
    k1, k2, k3, k4 = jax.random.split(key, 4)

    # NCHW, small shapes: N=2, C=4, H=W=16  (2048 elements, lane-aligned).
    pred = jax.random.normal(k1, (2, 4, 16, 16), dtype=jnp.float32)
    targ = (jax.random.uniform(k2, (2, 4, 16, 16)) > 0.5).astype(jnp.float32)
    loss = jaccard_loss(pred, targ, smooth=1e-6, reduction="mean",
                        loss_weight=1.0)
    loss = jax.block_until_ready(loss)
    ref = jaccard_loss_ref(pred, targ)
    # Tolerance allows the EUP approx-reciprocal sigmoid (a few ULPs/elem).
    assert jnp.allclose(loss, ref, atol=1e-4, rtol=1e-4), (loss, ref)

    # Non-lane-aligned shape: exercises the wrapper tail path + tiny blocks.
    pred2 = jax.random.normal(k3, (2, 3, 7, 5), dtype=jnp.float32)
    targ2 = (jax.random.uniform(k4, (2, 3, 7, 5)) > 0.5).astype(jnp.float32)
    loss2 = jaccard_loss(pred2, targ2, smooth=1e-6, reduction="sum",
                         loss_weight=0.5)
    loss2 = jax.block_until_ready(loss2)
    ref2 = jaccard_loss_ref(pred2, targ2, loss_weight=0.5)
    assert jnp.allclose(loss2, ref2, atol=1e-4, rtol=1e-4), (loss2, ref2)

    print("KERNEL_OK")
</pallas_src>

<mosaic_0001>
module attributes {stable_mosaic.version = 11 : i64} {
  func.func @_jaccard_partial_kernel(%arg0: i32, %arg1: i32, %arg2: memref<16x128xf32, #tpu.memory_space<vmem>>, %arg3: memref<16x128xf32, #tpu.memory_space<vmem>>, %arg4: memref<1x8x128xf32, #tpu.memory_space<vmem>>, %arg5: memref<1x8x128xf32, #tpu.memory_space<vmem>>, %arg6: memref<8x128xf32, #tpu.memory_space<vmem>>, %arg7: memref<8x128xf32, #tpu.memory_space<vmem>>) attributes {dimension_semantics = [#tpu.dimension_semantics<arbitrary>, #tpu.dimension_semantics<arbitrary>], iteration_bounds = array<i64: 1, 1>, scalar_prefetch = 0 : i64, scratch_operands = 2 : i64, tpu.core_type = #tpu.core_type<tc>, window_params = [{transform_indices = @transform_0, window_bounds = array<i64: 16, 128>}, {transform_indices = @transform_1, window_bounds = array<i64: 16, 128>}, {transform_indices = @transform_2, window_bounds = array<i64: 1, 8, 128>}, {transform_indices = @transform_3, window_bounds = array<i64: 1, 8, 128>}]} {
    %c0_i32 = arith.constant 0 : i32
    %0 = arith.cmpi eq, %arg1, %c0_i32 : i32
    %1 = arith.extui %0 : i1 to i32
    %c0_i32_0 = arith.constant 0 : i32
    %2 = arith.cmpi ne, %1, %c0_i32_0 : i32
    scf.if %2 {
      %cst = arith.constant 0.000000e+00 : f32
      %21 = vector.broadcast %cst : f32 to vector<8x128xf32>
      %c0 = arith.constant 0 : index
      %c0_10 = arith.constant 0 : index
      %22 = vector.load %arg6[%c0, %c0_10] : memref<8x128xf32, #tpu.memory_space<vmem>>, vector<8x128xf32>
      tpu.vector_store %arg6[%c0, %c0_10], %21 {strides = array<i32>} : memref<8x128xf32, #tpu.memory_space<vmem>>, vector<8x128xf32>,
      %cst_11 = arith.constant 0.000000e+00 : f32
      %23 = vector.broadcast %cst_11 : f32 to vector<8x128xf32>
      %c0_12 = arith.constant 0 : index
      %c0_13 = arith.constant 0 : index
      %24 = vector.load %arg7[%c0_12, %c0_13] : memref<8x128xf32, #tpu.memory_space<vmem>>, vector<8x128xf32>
      tpu.vector_store %arg7[%c0_12, %c0_13], %23 {strides = array<i32>} : memref<8x128xf32, #tpu.memory_space<vmem>>, vector<8x128xf32>,
    } else {
    }
    %c1_i32 = arith.constant 1 : i32
    %3 = arith.muli %arg0, %c1_i32 : i32
    %4 = arith.addi %3, %arg1 : i32
    %c16_i32 = arith.constant 16 : i32
    %5 = arith.muli %4, %c16_i32 : i32
    %c1_i32_1 = arith.constant 1 : i32
    %6 = arith.cmpi sge, %4, %c1_i32_1 : i32
    %c16_i32_2 = arith.constant 16 : i32
    %7 = arith.addi %5, %c16_i32_2 : i32
    %c16_i32_3 = arith.constant 16 : i32
    %8 = arith.cmpi sle, %7, %c16_i32_3 : i32
    %true = arith.constant true
    %9 = arith.xori %6, %true : i1
    %10 = arith.andi %8, %9 : i1
    %11 = arith.extui %10 : i1 to i32
    %c0_i32_4 = arith.constant 0 : i32
    %12 = arith.cmpi ne, %11, %c0_i32_4 : i32
    scf.if %12 {
      %c0 = arith.constant 0 : index
      %c0_10 = arith.constant 0 : index
      %21 = vector.load %arg2[%c0, %c0_10] : memref<16x128xf32, #tpu.memory_space<vmem>>, vector<16x128xf32>
      %cst = arith.constant 0.000000e+00 : f32
      %22 = vector.broadcast %cst : f32 to vector<16x128xf32>
      %23 = arith.subf %22, %21 : vector<16x128xf32>
      %24 = math.exp %23 : vector<16x128xf32>
      %cst_11 = arith.constant 1.000000e+00 : f32
      %25 = vector.broadcast %cst_11 : f32 to vector<16x128xf32>
      %26 = arith.addf %25, %24 : vector<16x128xf32>
      %27 = tpu.reciprocal %26 {approx = true} : vector<16x128xf32> -> vector<16x128xf32>
      %c0_12 = arith.constant 0 : index
      %c0_13 = arith.constant 0 : index
      %28 = vector.load %arg3[%c0_12, %c0_13] : memref<16x128xf32, #tpu.memory_space<vmem>>, vector<16x128xf32>
      %29 = arith.mulf %27, %28 : vector<16x128xf32>
      %30 = arith.addf %27, %28 : vector<16x128xf32>
      %c0_14 = arith.constant 0 : index
      %c0_15 = arith.constant 0 : index
      %31 = vector.load %arg6[%c0_14, %c0_15] : memref<8x128xf32, #tpu.memory_space<vmem>>, vector<8x128xf32>
      %32 = vector.shape_cast %29 : vector<16x128xf32> to vector<2x8x128xf32>
      %cst_16 = arith.constant dense<0.000000e+00> : vector<8x128xf32>
      %33 = vector.multi_reduction <add>, %32, %cst_16 [0] : vector<2x8x128xf32> to vector<8x128xf32>
      %34 = arith.addf %31, %33 : vector<8x128xf32>
      %c0_17 = arith.constant 0 : index
      %c0_18 = arith.constant 0 : index
      %35 = vector.load %arg6[%c0_17, %c0_18] : memref<8x128xf32, #tpu.memory_space<vmem>>, vector<8x128xf32>
      tpu.vector_store %arg6[%c0_17, %c0_18], %34 {strides = array<i32>} : memref<8x128xf32, #tpu.memory_space<vmem>>, vector<8x128xf32>,
      %c0_19 = arith.constant 0 : index
      %c0_20 = arith.constant 0 : index
      %36 = vector.load %arg7[%c0_19, %c0_20] : memref<8x128xf32, #tpu.memory_space<vmem>>, vector<8x128xf32>
      %37 = vector.shape_cast %30 : vector<16x128xf32> to vector<2x8x128xf32>
      %cst_21 = arith.constant dense<0.000000e+00> : vector<8x128xf32>
      %38 = vector.multi_reduction <add>, %37, %cst_21 [0] : vector<2x8x128xf32> to vector<8x128xf32>
      %39 = arith.addf %36, %38 : vector<8x128xf32>
      %c0_22 = arith.constant 0 : index
      %c0_23 = arith.constant 0 : index
      %40 = vector.load %arg7[%c0_22, %c0_23] : memref<8x128xf32, #tpu.memory_space<vmem>>, vector<8x128xf32>
      tpu.vector_store %arg7[%c0_22, %c0_23], %39 {strides = array<i32>} : memref<8x128xf32, #tpu.memory_space<vmem>>, vector<8x128xf32>,
    } else {
    }
    %true_5 = arith.constant true
    %13 = arith.xori %8, %true_5 : i1
    %true_6 = arith.constant true
    %14 = arith.xori %6, %true_6 : i1
    %15 = arith.andi %13, %14 : i1
    %16 = arith.extui %15 : i1 to i32
    %c0_i32_7 = arith.constant 0 : i32
    %17 = arith.cmpi ne, %16, %c0_i32_7 : i32
    scf.if %17 {
      %c16_i32_10 = arith.constant 16 : i32
      %21 = arith.subi %c16_i32_10, %5 : i32
      %22 = tpu.iota {dimensions = array<i32: 0>} : vector<16x128xi32>
      %23 = vector.broadcast %21 : i32 to vector<16x128xi32>
      %24 = arith.cmpi slt, %22, %23 : vector<16x128xi32>
      %c0 = arith.constant 0 : index
      %c0_11 = arith.constant 0 : index
      %25 = vector.load %arg2[%c0, %c0_11] : memref<16x128xf32, #tpu.memory_space<vmem>>, vector<16x128xf32>
      %cst = arith.constant 0.000000e+00 : f32
      %26 = vector.broadcast %cst : f32 to vector<16x128xf32>
      %27 = arith.subf %26, %25 : vector<16x128xf32>
      %28 = math.exp %27 : vector<16x128xf32>
      %cst_12 = arith.constant 1.000000e+00 : f32
      %29 = vector.broadcast %cst_12 : f32 to vector<16x128xf32>
      %30 = arith.addf %29, %28 : vector<16x128xf32>
      %31 = tpu.reciprocal %30 {approx = true} : vector<16x128xf32> -> vector<16x128xf32>
      %cst_13 = arith.constant 0.000000e+00 : f32
      %32 = vector.broadcast %cst_13 : f32 to vector<16x128xf32>
      %33 = arith.select %24, %31, %32 : vector<16x128xi1>, vector<16x128xf32>
      %c0_14 = arith.constant 0 : index
      %c0_15 = arith.constant 0 : index
      %34 = vector.load %arg3[%c0_14, %c0_15] : memref<16x128xf32, #tpu.memory_space<vmem>>, vector<16x128xf32>
      %cst_16 = arith.constant 0.000000e+00 : f32
      %35 = vector.broadcast %cst_16 : f32 to vector<16x128xf32>
      %36 = arith.select %24, %34, %35 : vector<16x128xi1>, vector<16x128xf32>
      %37 = arith.mulf %33, %36 : vector<16x128xf32>
      %38 = arith.addf %33, %36 : vector<16x128xf32>
      %c0_17 = arith.constant 0 : index
      %c0_18 = arith.constant 0 : index
      %39 = vector.load %arg6[%c0_17, %c0_18] : memref<8x128xf32, #tpu.memory_space<vmem>>, vector<8x128xf32>
      %40 = vector.shape_cast %37 : vector<16x128xf32> to vector<2x8x128xf32>
      %cst_19 = arith.constant dense<0.000000e+00> : vector<8x128xf32>
      %41 = vector.multi_reduction <add>, %40, %cst_19 [0] : vector<2x8x128xf32> to vector<8x128xf32>
      %42 = arith.addf %39, %41 : vector<8x128xf32>
      %c0_20 = arith.constant 0 : index
      %c0_21 = arith.constant 0 : index
      %43 = vector.load %arg6[%c0_20, %c0_21] : memref<8x128xf32, #tpu.memory_space<vmem>>, vector<8x128xf32>
      tpu.vector_store %arg6[%c0_20, %c0_21], %42 {strides = array<i32>} : memref<8x128xf32, #tpu.memory_space<vmem>>, vector<8x128xf32>,
      %c0_22 = arith.constant 0 : index
      %c0_23 = arith.constant 0 : index
      %44 = vector.load %arg7[%c0_22, %c0_23] : memref<8x128xf32, #tpu.memory_space<vmem>>, vector<8x128xf32>
      %45 = vector.shape_cast %38 : vector<16x128xf32> to vector<2x8x128xf32>
      %cst_24 = arith.constant dense<0.000000e+00> : vector<8x128xf32>
      %46 = vector.multi_reduction <add>, %45, %cst_24 [0] : vector<2x8x128xf32> to vector<8x128xf32>
      %47 = arith.addf %44, %46 : vector<8x128xf32>
      %c0_25 = arith.constant 0 : index
      %c0_26 = arith.constant 0 : index
      %48 = vector.load %arg7[%c0_25, %c0_26] : memref<8x128xf32, #tpu.memory_space<vmem>>, vector<8x128xf32>
      tpu.vector_store %arg7[%c0_25, %c0_26], %47 {strides = array<i32>} : memref<8x128xf32, #tpu.memory_space<vmem>>, vector<8x128xf32>,
    } else {
    }
    %c0_i32_8 = arith.constant 0 : i32
    %18 = arith.cmpi eq, %arg1, %c0_i32_8 : i32
    %19 = arith.extui %18 : i1 to i32
    %c0_i32_9 = arith.constant 0 : i32
    %20 = arith.cmpi ne, %19, %c0_i32_9 : i32
    scf.if %20 {
      %c0 = arith.constant 0 : index
      %c0_10 = arith.constant 0 : index
      %21 = vector.load %arg6[%c0, %c0_10] : memref<8x128xf32, #tpu.memory_space<vmem>>, vector<8x128xf32>
      %c0_11 = arith.constant 0 : index
      %c0_12 = arith.constant 0 : index
      %c0_13 = arith.constant 0 : index
      %22 = vector.load %arg4[%c0_11, %c0_12, %c0_13] : memref<1x8x128xf32, #tpu.memory_space<vmem>>, vector<1x8x128xf32>
      %23 = vector.shape_cast %22 : vector<1x8x128xf32> to vector<8x128xf32>
      %24 = vector.shape_cast %21 : vector<8x128xf32> to vector<1x8x128xf32>
      tpu.vector_store %arg4[%c0_11, %c0_12, %c0_13], %24 {strides = array<i32>} : memref<1x8x128xf32, #tpu.memory_space<vmem>>, vector<1x8x128xf32>,
      %c0_14 = arith.constant 0 : index
      %c0_15 = arith.constant 0 : index
      %25 = vector.load %arg7[%c0_14, %c0_15] : memref<8x128xf32, #tpu.memory_space<vmem>>, vector<8x128xf32>
      %c0_16 = arith.constant 0 : index
      %c0_17 = arith.constant 0 : index
      %c0_18 = arith.constant 0 : index
      %26 = vector.load %arg5[%c0_16, %c0_17, %c0_18] : memref<1x8x128xf32, #tpu.memory_space<vmem>>, vector<1x8x128xf32>
      %27 = vector.shape_cast %26 : vector<1x8x128xf32> to vector<8x128xf32>
      %28 = vector.shape_cast %25 : vector<8x128xf32> to vector<1x8x128xf32>
      tpu.vector_store %arg5[%c0_16, %c0_17, %c0_18], %28 {strides = array<i32>} : memref<1x8x128xf32, #tpu.memory_space<vmem>>, vector<1x8x128xf32>,
    } else {
    }
    return
  }
  func.func @transform_0(%arg0: i32, %arg1: i32) -> (i32, i32) {
    %c1_i32 = arith.constant 1 : i32
    %0 = arith.muli %arg0, %c1_i32 : i32
    %1 = arith.addi %0, %arg1 : i32
    %c0_i32 = arith.constant 0 : i32
    %2 = arith.minsi %1, %c0_i32 : i32
    %c0_i32_0 = arith.constant 0 : i32
    %c0_i32_1 = arith.constant 0 : i32
    return %2, %c0_i32_0 : i32, i32
  }
  func.func @transform_1(%arg0: i32, %arg1: i32) -> (i32, i32) {
    %c1_i32 = arith.constant 1 : i32
    %0 = arith.muli %arg0, %c1_i32 : i32
    %1 = arith.addi %0, %arg1 : i32
    %c0_i32 = arith.constant 0 : i32
    %2 = arith.minsi %1, %c0_i32 : i32
    %c0_i32_0 = arith.constant 0 : i32
    %c0_i32_1 = arith.constant 0 : i32
    return %2, %c0_i32_0 : i32, i32
  }
  func.func @transform_2(%arg0: i32, %arg1: i32) -> (i32, i32, i32) {
    %c0_i32 = arith.constant 0 : i32
    %c0_i32_0 = arith.constant 0 : i32
    %c0_i32_1 = arith.constant 0 : i32
    return %arg0, %c0_i32, %c0_i32_0 : i32, i32, i32
  }
  func.func @transform_3(%arg0: i32, %arg1: i32) -> (i32, i32, i32) {
    %c0_i32 = arith.constant 0 : i32
    %c0_i32_0 = arith.constant 0 : i32
    %c0_i32_1 = arith.constant 0 : i32
    return %arg0, %c0_i32, %c0_i32_0 : i32, i32, i32
  }
}

</mosaic_0001>

<llo_original>
// kernel: tpu_custom_call.1
$region0: #{tpu_custom_call.1}
  #allocation0 [shape = 'u32[]', space=smem, size = 0x4, offset = 0x4, fixed_abs, tag = 'smem constant byte address 0x4 - core index']
  #allocation1 [shape = 'u32[144,128]{1,0:T(1,128)}', space=vmem, size = 0x12000, scoped, tag = 'internal scratch']
  #allocation2 [shape = 'f32[8,128]{1,0:T(8,128)}', space=vmem, size = 0x1000, scoped, tag = 'scratch operand']
  #allocation3 [shape = 'f32[8,128]{1,0:T(8,128)}', space=vmem, size = 0x1000, scoped, tag = 'scratch operand']
  %s0 = inlined_call_operand.hbm [shape: f32[16,128], index: 0, kind: input, shape index: {}]
  %s1 = inlined_call_operand.hbm [shape: f32[16,128], index: 1, kind: input, shape index: {}]
  %s2 = inlined_call_operand.hbm [shape: f32[1,8,128], index: 2, kind: output, shape index: {0}]
  %s3 = inlined_call_operand.hbm [shape: f32[1,8,128], index: 3, kind: output, shape index: {1}]
  %4 = xla_tuple %s2, %s3
  %s5 = sld [smem:[#allocation0]]
  $region50: #{tpu_custom_call.1} parent=0
    _
  %s7 = ssub.s32 1, %s5
  %s8 = scalar_select 0, %s7, %s5
  $region1: #{tpu_custom_call.1} parent=0
    #allocation4 [shape = 'u8[8192]{0}', space=vmem, size = 0x2000, scoped, tag = 'input window, operand 0, single buffered']
    #allocation5 [shape = 's32[1]{0}', space=sflag, size = 0x4, scoped, tag = 'scoped memory for tpu_custom_call.1']
    #allocation6 [shape = 's32[1]{0}', space=sflag, size = 0x4, scoped, tag = 'scoped memory for tpu_custom_call.1']
    #allocation7 [shape = 'u8[8192]{0}', space=vmem, size = 0x2000, scoped, tag = 'input window, operand 1, single buffered']
    #allocation8 [shape = 's32[1]{0}', space=sflag, size = 0x4, scoped, tag = 'scoped memory for tpu_custom_call.1']
    #allocation9 [shape = 'u8[4096]{0}', space=vmem, size = 0x1000, scoped, tag = 'output window, operand 0, single buffered']
    #allocation10 [shape = 'u8[4096]{0}', space=vmem, size = 0x1000, scoped, tag = 'output window, operand 1, single buffered']
    #allocation11 [shape = 's32[1]{0}', space=sflag, size = 0x4, scoped, tag = 'scoped memory for tpu_custom_call.1']
    %9 = vsyncpa [#allocation5], 0
    %10 = vsyncpa [#allocation8], 0
    %11 = vsyncpa [#allocation6], 0
    %12 = vsyncpa [#allocation11], 0
    // Predicated region
    $region2: #{tpu_custom_call.1} parent=1 // pred_check
      _
    $region3: #{tpu_custom_call.1} parent=1 // pred_check_branch
      %14 = sbr.rel (0) target = $region5
    $region4: #{tpu_custom_call.1} parent=1 // pred_region
      %s15 = sadd.s32 0, 0
      %p16 = scmp.lt.s32.totalorder %s15, 0
      %s17 = scalar_select %p16, %s15, 0
      %s18 = smul.u32 2, %s17
      %s20 = ssub.s32 256, 256
      %21 = vsyncadd [#allocation5], %s20
      %s22 = smul.addr %s18, 128
      %s23 = scalar_lea.hbm %s0, %s22
      %s24 = sshll.u32 [#allocation4], 4
      %s25 = int_to_ptr.vmem [resolvable:$true] %s24
      %30 = dma.hbm_to_vmem [thread:$0]  %s23, 256, %s25, [#allocation5], 128, 128, 8
    $region5: #{tpu_custom_call.1} parent=1 // pred_fallthru
      _
    // Predicated region
    $region6: #{tpu_custom_call.1} parent=1 // pred_check
      _
    $region7: #{tpu_custom_call.1} parent=1 // pred_check_branch
      %32 = sbr.rel (0) target = $region9
    $region8: #{tpu_custom_call.1} parent=1 // pred_region
      %s33 = sadd.s32 0, 0
      %p34 = scmp.lt.s32.totalorder %s33, 0
      %s35 = scalar_select %p34, %s33, 0
      %s36 = smul.u32 2, %s35
      %s38 = ssub.s32 256, 256
      %39 = vsyncadd [#allocation8], %s38
      %s40 = smul.addr %s36, 128
      %s41 = scalar_lea.hbm %s1, %s40
      %s42 = sshll.u32 [#allocation7], 4
      %s43 = int_to_ptr.vmem [resolvable:$true] %s42
      %48 = dma.hbm_to_vmem [thread:$0]  %s41, 256, %s43, [#allocation8], 128, 128, 8
    $region9: #{tpu_custom_call.1} parent=1 // pred_fallthru
      _
    // Predicated region
    $region10: #{tpu_custom_call.1} parent=1 // pred_check
      _
    $region11: #{tpu_custom_call.1} parent=1 // pred_check_branch
      %50 = sbr.rel (0) target = $region13
    $region12: #{tpu_custom_call.1} parent=1 // pred_region
      %51 = dma.done [#allocation5], 256
    $region13: #{tpu_custom_call.1} parent=1 // pred_fallthru
      _
    // Predicated region
    $region14: #{tpu_custom_call.1} parent=1 // pred_check
      _
    $region15: #{tpu_custom_call.1} parent=1 // pred_check_branch
      %53 = sbr.rel (0) target = $region17
    $region16: #{tpu_custom_call.1} parent=1 // pred_region
      %54 = dma.done [#allocation8], 256
    $region17: #{tpu_custom_call.1} parent=1 // pred_fallthru
      _
    %s55 = sadd.s32 0, 0
    %p56 = scmp.lt.s32.totalorder %s55, 0
    %s57 = scalar_select %p56, %s55, 0
    %s58 = smul.u32 2, %s57
    %s59 = sadd.s32 0, 0
    %p60 = scmp.lt.s32.totalorder %s59, 0
    %s61 = scalar_select %p60, %s59, 0
    %s62 = smul.u32 2, %s61
    %p63 = scmp.eq.s32.totalorder 0, 0
    // Predicated region
    $region18: #{tpu_custom_call.1} parent=1 // pred_check
      %p64 = pneg %p63
    $region19: #{tpu_custom_call.1} parent=1 // pred_check_branch
      %66 = sbr.rel (%p64) target = $region21
    $region20: #{tpu_custom_call.1} parent=1 // pred_region
      %67 = vst [vmem:[#allocation2] sm:$0xff] 0.0
      %68 = vst [vmem:[#allocation3] sm:$0xff] 0.0
    $region21: #{tpu_custom_call.1} parent=1 // pred_fallthru
      _
    %s69 = sadd.s32 0, 0
    %s70 = smul.u32 %s69, 16
    %s71 = sadd.s32 %s70, 16
    %p72 = scmp.le.s32.totalorder %s71, 16
    %p73 = scmp.lt.s32.totalorder %s69, 1
    %p74 = pnand %p72, %p73
    %p75 = pneg %p74
    // Predicated region
    $region22: #{tpu_custom_call.1} parent=1 // pred_check
      _
    $region23: #{tpu_custom_call.1} parent=1 // pred_check_branch
      %77 = sbr.rel (%p74) target = $region25
    $region24: #{tpu_custom_call.1} parent=1 // pred_region
      %v78 = vld [vmem:[#allocation4] sm:$0xff]
      %v79 = vld [vmem:[#allocation4 + $0x8] sm:$0xff]
      %v80 = vsub.f32 0.0, %v78
      %v81 = vsub.f32 0.0, %v79
      %v82 = vmul.f32 %v80, 1.442695
      %v83 = vpow.pop %v82
      %v84 = vmul.f32 %v81, 1.442695
      %v85 = vpow.pop %v84
      %v86 = vadd.f32 %v83, 1.0
      %v87 = vadd.f32 %v85, 1.0
      %v88 = vrcp.pop %v86
      %v89 = vrcp.pop %v87
      %v90 = vld [vmem:[#allocation7] sm:$0xff]
      %v91 = vld [vmem:[#allocation7 + $0x8] sm:$0xff]
      %v92 = vmul.f32 %v88, %v90
      %v93 = vmul.f32 %v89, %v91
      %v94 = vadd.f32 %v88, %v90
      %v95 = vadd.f32 %v89, %v91
      %v96 = vld [vmem:[#allocation2] sm:$0xff]
      %v97 = vadd.f32 %v92, %v93
      %v98 = vadd.f32 %v96, %v97
      %99 = vst [vmem:[#allocation2] sm:$0xff] %v98
      %v100 = vld [vmem:[#allocation3] sm:$0xff]
      %v101 = vadd.f32 %v94, %v95
      %v102 = vadd.f32 %v100, %v101
      %103 = vst [vmem:[#allocation3] sm:$0xff] %v102
    $region25: #{tpu_custom_call.1} parent=1 // pred_fallthru
      _
    %p104 = scmp.gt.s32.totalorder %s71, 16
    %p105 = pnand %p104, %p73
    %p106 = pneg %p105
    // Predicated region
    $region26: #{tpu_custom_call.1} parent=1 // pred_check
      _
    $region27: #{tpu_custom_call.1} parent=1 // pred_check_branch
      %108 = sbr.rel (%p105) target = $region29
    $region28: #{tpu_custom_call.1} parent=1 // pred_region
      %s109 = ssub.s32 16, %s70
      %v110 = vlaneseq
      %v111 = vshrl.u32 %v110, 7
      %v112 = vadd.s32 %v111, 8
      %v113 = vstv %s109
      %vm114 = vcmp.lt.s32.totalorder %v111, %v113
      %vm115 = vcmp.lt.s32.totalorder %v112, %v113
      %v116 = vld [vmem:[#allocation4] sm:$0xff]
      %v117 = vld [vmem:[#allocation4 + $0x8] sm:$0xff]
      %v118 = vsub.f32 0.0, %v116
      %v119 = vsub.f32 0.0, %v117
      %v120 = vmul.f32 %v118, 1.442695
      %v121 = vpow.pop %v120
      %v122 = vmul.f32 %v119, 1.442695
      %v123 = vpow.pop %v122
      %v124 = vadd.f32 %v121, 1.0
      %v125 = vadd.f32 %v123, 1.0
      %v126 = vrcp.pop %v124
      %v127 = vrcp.pop %v125
      %v128 = vsel %vm114, %v126, 0.0
      %v129 = vsel %vm115, %v127, 0.0
      %v130 = vld [vmem:[#allocation7] sm:$0xff]
      %v131 = vld [vmem:[#allocation7 + $0x8] sm:$0xff]
      %v132 = vsel %vm114, %v130, 0.0
      %v133 = vsel %vm115, %v131, 0.0
      %v134 = vmul.f32 %v128, %v132
      %v135 = vmul.f32 %v129, %v133
      %v136 = vadd.f32 %v128, %v132
      %v137 = vadd.f32 %v129, %v133
      %v138 = vld [vmem:[#allocation2] sm:$0xff]
      %v139 = vadd.f32 %v134, %v135
      %v140 = vadd.f32 %v138, %v139
      %141 = vst [vmem:[#allocation2] sm:$0xff] %v140
      %v142 = vld [vmem:[#allocation3] sm:$0xff]
      %v143 = vadd.f32 %v136, %v137
      %v144 = vadd.f32 %v142, %v143
      %145 = vst [vmem:[#allocation3] sm:$0xff] %v144
    $region29: #{tpu_custom_call.1} parent=1 // pred_fallthru
      _
    // Predicated region
    $region30: #{tpu_custom_call.1} parent=1 // pred_check
      %p146 = pneg %p63
    $region31: #{tpu_custom_call.1} parent=1 // pred_check_branch
      %148 = sbr.rel (%p146) target = $region33
    $region32: #{tpu_custom_call.1} parent=1 // pred_region
      %v149 = vld [vmem:[#allocation2] sm:$0xff]
      %150 = vst [vmem:[#allocation9] sm:$0xff] %v149
      %v151 = vld [vmem:[#allocation3] sm:$0xff]
      %152 = vst [vmem:[#allocation10] sm:$0xff] %v151
    $region33: #{tpu_custom_call.1} parent=1 // pred_fallthru
      _
    // Predicated region
    $region34: #{tpu_custom_call.1} parent=1 // pred_check
      _
    $region35: #{tpu_custom_call.1} parent=1 // pred_check_branch
      %154 = sbr.rel (0) target = $region37
    $region36: #{tpu_custom_call.1} parent=1 // pred_region
      %s156 = ssub.s32 128, 128
      %157 = vsyncadd [#allocation6], %s156
      %s159 = sshll.u32 [#allocation9], 4
      %s160 = int_to_ptr.vmem [resolvable:$true] %s159
      %162 = dma.vmem_to_hbm [thread:$0]  %s160, 128, %s2, [#allocation6]
    $region37: #{tpu_custom_call.1} parent=1 // pred_fallthru
      _
    // Predicated region
    $region38: #{tpu_custom_call.1} parent=1 // pred_check
      _
    $region39: #{tpu_custom_call.1} parent=1 // pred_check_branch
      %164 = sbr.rel (0) target = $region41
    $region40: #{tpu_custom_call.1} parent=1 // pred_region
      %s166 = ssub.s32 128, 128
      %167 = vsyncadd [#allocation11], %s166
      %s169 = sshll.u32 [#allocation10], 4
      %s170 = int_to_ptr.vmem [resolvable:$true] %s169
      %172 = dma.vmem_to_hbm [thread:$0]  %s170, 128, %s3, [#allocation11]
    $region41: #{tpu_custom_call.1} parent=1 // pred_fallthru
      _
    // Predicated region
    $region42: #{tpu_custom_call.1} parent=1 // pred_check
      _
    $region43: #{tpu_custom_call.1} parent=1 // pred_check_branch
      %174 = sbr.rel (0) target = $region45
    $region44: #{tpu_custom_call.1} parent=1 // pred_region
      %175 = dma.done [#allocation6], 128
    $region45: #{tpu_custom_call.1} parent=1 // pred_fallthru
      _
    // Predicated region
    $region46: #{tpu_custom_call.1} parent=1 // pred_check
      _
    $region47: #{tpu_custom_call.1} parent=1 // pred_check_branch
      %177 = sbr.rel (0) target = $region49
    $region48: #{tpu_custom_call.1} parent=1 // pred_region
      %178 = dma.done [#allocation11], 128
    $region49: #{tpu_custom_call.1} parent=1 // pred_fallthru
      _
    %179 = vsyncpa [#allocation5], 1
    %180 = vsyncpa [#allocation8], 1
    %181 = vsyncpa [#allocation6], 1
    %182 = vsyncpa [#allocation11], 1

</llo_original>
